<compile_context>
chip_gen: v5e
topology: v5e:2x2
jax: 0.10.0
libtpu: 0.0.40
codegen_flags: <defaults>
</compile_context>

<pallas_src>
import functools

import jax
import jax.numpy as jnp
from jax.experimental import pallas as pl
from jax.experimental.pallas import tpu as pltpu


def _round_up(n: int, m: int) -> int:
    return ((n + m - 1) // m) * m


def _mean_keepdim_kernel(x_ref, o_ref, acc_ref, *, cols: int, tc: int,
                         inv_cols: float, mask_cols: bool):
    """Row-mean with keepdim; grid axis 1 (columns) is the reduction axis."""
    k = pl.program_id(1)

    @pl.when(k == 0)
    def _():
        acc_ref[...] = jnp.zeros_like(acc_ref)

    x = x_ref[...]
    tm = x.shape[0]
    n_lane_blocks = tc // 128

    if mask_cols:
        # Hoisted (tm, 128) lane-index iota; compared per lane-block against the
        # true column count so garbage in the ragged last column tile is zeroed.
        lane_idx = jax.lax.broadcasted_iota(jnp.int32, (tm, 128), 1)
        col_base = k * tc  # dynamic scalar

    def lane_block(j):
        blk = x[:, j * 128:(j + 1) * 128].astype(jnp.float32)  # per-vreg upcast
        if mask_cols:
            valid = (lane_idx + (col_base + j * 128)) < cols
            blk = jnp.where(valid, blk, 0.0)
        return blk

    # Pure VALU adds on full (tm, 128) vregs; no per-step cross-lane reduce.
    s = lane_block(0)
    for j in range(1, n_lane_blocks):
        s = s + lane_block(j)
    acc_ref[...] += s

    @pl.when(k == pl.num_programs(1) - 1)
    def _():
        # Single XLU cross-lane reduce + static 1/cols scale, once per row tile.
        row_sum = jnp.sum(acc_ref[...], axis=1, keepdims=True)
        o_ref[...] = (row_sum * inv_cols).astype(o_ref.dtype)


def simple_mean_keepdim(x, *, block_rows: int = 512, block_cols: int = 2048,
                        min_pallas_bytes: int = 1 << 20):
    """mean over dim=1 with keepdim, matching torch.mean(x, 1, keepdim=True)."""
    if x.ndim != 2:
        # TODO(synk): only the 2-D case (the module's example input) is kernelized.
        return jnp.mean(x, axis=1, keepdims=True)

    rows, cols = x.shape
    itemsize = x.dtype.itemsize

    # Tiny-input fast path: Pallas launch + DMA-setup overhead dominates below ~1 MiB.
    if rows * cols * itemsize < min_pallas_bytes:
        return jnp.mean(x, axis=1, keepdims=True)

    # Dtype-dependent sublane multiple (f32: 8, bf16: 16, int8/fp8: 32).
    sub = {1: 32, 2: 16, 4: 8}.get(itemsize, 8)

    # Row tile: clamp to array, round to sublane multiple, and cap so the
    # "parallel" row axis has >= 2 tiles (keeps both v7x TensorCores busy).
    tm = min(block_rows, _round_up(rows, sub))
    if rows > sub:
        tm = min(tm, _round_up(-(-rows // 2), sub))
    tm = max(sub, _round_up(tm, sub))

    # Column tile: dtype-aware in bytes (block_cols "f32-equivalent" lanes).
    tc = min(block_cols * max(1, 4 // itemsize), _round_up(cols, 128))
    tc = max(128, _round_up(tc, 128))

    grid = (pl.cdiv(rows, tm), pl.cdiv(cols, tc))
    mask_cols = (cols % tc) != 0

    kernel = functools.partial(
        _mean_keepdim_kernel,
        cols=cols, tc=tc, inv_cols=1.0 / cols, mask_cols=mask_cols)

    out = pl.pallas_call(
        kernel,
        out_shape=jax.ShapeDtypeStruct((rows, 1), x.dtype),
        grid_spec=pltpu.PrefetchScalarGridSpec(
            num_scalar_prefetch=0,
            grid=grid,
            in_specs=[pl.BlockSpec((tm, tc), lambda i, k: (i, k))],
            out_specs=pl.BlockSpec((tm, 1), lambda i, k: (i, 0)),
            scratch_shapes=[pltpu.VMEM((tm, 128), jnp.float32)],
        ),
        compiler_params=pltpu.CompilerParams(
            dimension_semantics=("parallel", "arbitrary"),
            vmem_limit_bytes=32 * 1024 * 1024,   # safe on v7x (64 MiB VMEM/TC)
        ),
        cost_estimate=pl.CostEstimate(
            flops=rows * cols,
            transcendentals=0,
            bytes_accessed=rows * cols * itemsize + rows * itemsize,
        ),
    )(x)
    return out


if __name__ == "__main__":
    key = jax.random.PRNGKey(0)
    k1, k2, k3, k4 = jax.random.split(key, 4)

    # 1) Module's example-input shape (5, 5): tiny-input fast path.
    x_small = jax.random.normal(k1, (5, 5), dtype=jnp.float32)
    z_small = simple_mean_keepdim(x_small)
    jax.block_until_ready(z_small)
    assert z_small.shape == (5, 1)
    assert jnp.allclose(z_small, jnp.mean(x_small, axis=1, keepdims=True),
                        atol=1e-6, rtol=1e-6)

    # 2) Ragged Pallas path: 4x4 grid, tail-column masking, ragged last row tile.
    x_rag = jax.random.normal(k2, (500, 1000), dtype=jnp.float32)
    z_rag = simple_mean_keepdim(x_rag, block_rows=128, block_cols=256)
    jax.block_until_ready(z_rag)
    assert z_rag.shape == (500, 1)
    assert jnp.allclose(z_rag, jnp.mean(x_rag, axis=1, keepdims=True),
                        atol=1e-4, rtol=1e-5)

    # 3) Default tile sizes, aligned shape (exercises the 2-row-tile cap).
    x_big = jax.random.normal(k3, (512, 2048), dtype=jnp.float32)
    z_big = simple_mean_keepdim(x_big)
    jax.block_until_ready(z_big)
    assert z_big.shape == (512, 1)
    assert jnp.allclose(z_big, jnp.mean(x_big, axis=1, keepdims=True),
                        atol=1e-4, rtol=1e-5)

    # 4) bf16 input: dtype-aware sublane rounding (16) and byte-sized column tile.
    x_bf = jax.random.normal(k4, (512, 1536), dtype=jnp.float32).astype(jnp.bfloat16)
    z_bf = simple_mean_keepdim(x_bf)
    jax.block_until_ready(z_bf)
    assert z_bf.shape == (512, 1)
    ref_bf = jnp.mean(x_bf.astype(jnp.float32), axis=1, keepdims=True)
    assert jnp.allclose(z_bf.astype(jnp.float32), ref_bf, atol=2e-3, rtol=2e-2)

    print("KERNEL_OK")
</pallas_src>

<mosaic_0001>
module attributes {stable_mosaic.version = 11 : i64} {
  func.func @_mean_keepdim_kernel(%arg0: i32, %arg1: i32, %arg2: memref<128x256xf32, #tpu.memory_space<vmem>>, %arg3: memref<128x1xf32, #tpu.memory_space<vmem>>, %arg4: memref<128x128xf32, #tpu.memory_space<vmem>>) attributes {dimension_semantics = [#tpu.dimension_semantics<parallel>, #tpu.dimension_semantics<arbitrary>], iteration_bounds = array<i64: 4, 4>, scalar_prefetch = 0 : i64, scratch_operands = 1 : i64, tpu.core_type = #tpu.core_type<tc>, window_params = [{transform_indices = @transform_0, window_bounds = array<i64: 128, 256>}, {transform_indices = @transform_1, window_bounds = array<i64: 128, 1>}]} {
    %c0_i32 = arith.constant 0 : i32
    %0 = arith.cmpi eq, %arg1, %c0_i32 : i32
    %1 = arith.extui %0 : i1 to i32
    %c0_i32_0 = arith.constant 0 : i32
    %2 = arith.cmpi ne, %1, %c0_i32_0 : i32
    scf.if %2 {
      %cst_10 = arith.constant 0.000000e+00 : f32
      %29 = vector.broadcast %cst_10 : f32 to vector<128x128xf32>
      %c0_11 = arith.constant 0 : index
      %c0_12 = arith.constant 0 : index
      %30 = vector.load %arg4[%c0_11, %c0_12] : memref<128x128xf32, #tpu.memory_space<vmem>>, vector<128x128xf32>
      tpu.vector_store %arg4[%c0_11, %c0_12], %29 {strides = array<i32>} : memref<128x128xf32, #tpu.memory_space<vmem>>, vector<128x128xf32>,
    } else {
    }
    %c0 = arith.constant 0 : index
    %c0_1 = arith.constant 0 : index
    %3 = vector.load %arg2[%c0, %c0_1] : memref<128x256xf32, #tpu.memory_space<vmem>>, vector<128x256xf32>
    %4 = tpu.iota {dimensions = array<i32: 1>} : vector<128x128xi32>
    %c256_i32 = arith.constant 256 : i32
    %5 = arith.muli %arg1, %c256_i32 : i32
    %6 = vector.extract_strided_slice %3 {offsets = [0, 0], sizes = [128, 128], strides = [1, 1]} : vector<128x256xf32> to vector<128x128xf32>
    %c0_i32_2 = arith.constant 0 : i32
    %7 = arith.addi %5, %c0_i32_2 : i32
    %8 = vector.broadcast %7 : i32 to vector<128x128xi32>
    %9 = arith.addi %4, %8 : vector<128x128xi32>
    %c1000_i32 = arith.constant 1000 : i32
    %10 = vector.broadcast %c1000_i32 : i32 to vector<128x128xi32>
    %11 = arith.cmpi slt, %9, %10 : vector<128x128xi32>
    %cst = arith.constant 0.000000e+00 : f32
    %12 = vector.broadcast %cst : f32 to vector<128x128xf32>
    %13 = arith.select %11, %6, %12 : vector<128x128xi1>, vector<128x128xf32>
    %14 = vector.extract_strided_slice %3 {offsets = [0, 128], sizes = [128, 128], strides = [1, 1]} : vector<128x256xf32> to vector<128x128xf32>
    %c128_i32 = arith.constant 128 : i32
    %15 = arith.addi %5, %c128_i32 : i32
    %16 = vector.broadcast %15 : i32 to vector<128x128xi32>
    %17 = arith.addi %4, %16 : vector<128x128xi32>
    %c1000_i32_3 = arith.constant 1000 : i32
    %18 = vector.broadcast %c1000_i32_3 : i32 to vector<128x128xi32>
    %19 = arith.cmpi slt, %17, %18 : vector<128x128xi32>
    %cst_4 = arith.constant 0.000000e+00 : f32
    %20 = vector.broadcast %cst_4 : f32 to vector<128x128xf32>
    %21 = arith.select %19, %14, %20 : vector<128x128xi1>, vector<128x128xf32>
    %22 = arith.addf %13, %21 : vector<128x128xf32>
    %c0_5 = arith.constant 0 : index
    %c0_6 = arith.constant 0 : index
    %23 = vector.load %arg4[%c0_5, %c0_6] : memref<128x128xf32, #tpu.memory_space<vmem>>, vector<128x128xf32>
    %24 = arith.addf %23, %22 : vector<128x128xf32>
    %c0_7 = arith.constant 0 : index
    %c0_8 = arith.constant 0 : index
    %25 = vector.load %arg4[%c0_7, %c0_8] : memref<128x128xf32, #tpu.memory_space<vmem>>, vector<128x128xf32>
    tpu.vector_store %arg4[%c0_7, %c0_8], %24 {strides = array<i32>} : memref<128x128xf32, #tpu.memory_space<vmem>>, vector<128x128xf32>,
    %c3_i32 = arith.constant 3 : i32
    %26 = arith.cmpi eq, %arg1, %c3_i32 : i32
    %27 = arith.extui %26 : i1 to i32
    %c0_i32_9 = arith.constant 0 : i32
    %28 = arith.cmpi ne, %27, %c0_i32_9 : i32
    scf.if %28 {
      %c0_10 = arith.constant 0 : index
      %c0_11 = arith.constant 0 : index
      %29 = vector.load %arg4[%c0_10, %c0_11] : memref<128x128xf32, #tpu.memory_space<vmem>>, vector<128x128xf32>
      %cst_12 = arith.constant dense<0.000000e+00> : vector<128xf32>
      %30 = vector.multi_reduction <add>, %29, %cst_12 [1] : vector<128x128xf32> to vector<128xf32>
      %31 = vector.shape_cast %30 : vector<128xf32> to vector<128x1xf32>
      %cst_13 = arith.constant 1.000000e-03 : f32
      %32 = vector.broadcast %cst_13 : f32 to vector<128x1xf32>
      %33 = arith.mulf %31, %32 : vector<128x1xf32>
      %c0_14 = arith.constant 0 : index
      %c0_15 = arith.constant 0 : index
      %34 = vector.load %arg3[%c0_14, %c0_15] : memref<128x1xf32, #tpu.memory_space<vmem>>, vector<128x1xf32>
      tpu.vector_store %arg3[%c0_14, %c0_15], %33 {strides = array<i32>} : memref<128x1xf32, #tpu.memory_space<vmem>>, vector<128x1xf32>,
    } else {
    }
    return
  }
  func.func @transform_0(%arg0: i32, %arg1: i32) -> (i32, i32) {
    %c0_i32 = arith.constant 0 : i32
    return %arg0, %arg1 : i32, i32
  }
  func.func @transform_1(%arg0: i32, %arg1: i32) -> (i32, i32) {
    %c0_i32 = arith.constant 0 : i32
    %c0_i32_0 = arith.constant 0 : i32
    return %arg0, %c0_i32 : i32, i32
  }
}

</mosaic_0001>

<llo_original>
// kernel: tpu_custom_call.1
$region0: #{tpu_custom_call.1}
  #allocation0 [shape = 'u32[]', space=smem, size = 0x4, offset = 0x4, fixed_abs, tag = 'smem constant byte address 0x4 - core index']
  #allocation1 [shape = 'u32[72,128]{1,0:T(1,128)}', space=vmem, size = 0x9000, scoped, tag = 'internal scratch']
  #allocation2 [shape = 'f32[128,128]{1,0:T(8,128)}', space=vmem, size = 0x10000, scoped, tag = 'scratch operand']
  %s0 = inlined_call_operand.vmem [shape: f32[500,1000], index: 0, kind: input, shape index: {}]
  %s1 = inlined_call_operand.vmem [shape: f32[500,1], index: 1, kind: output, shape index: {}]
  %s2 = sld [smem:[#allocation0]]
  $region123: #{tpu_custom_call.1} parent=0
    _
  %s4 = ssub.s32 1, %s2
  %s5 = scalar_select 0, %s4, %s2
  $region1: #{tpu_custom_call.1} parent=0
    #allocation3 [shape = 'u8[262144]{0}', space=vmem, size = 0x40000, scoped, tag = 'input window, operand 0']
    #allocation4 [shape = 'u8[131072]{0}', space=vmem, size = 0x20000, scoped, tag = 'output window, operand 0']
    loop: start=0, step=1, limit=18
    $region2: #{tpu_custom_call.1} parent=1 // loop_pre_header
      _
    $region3: #{tpu_custom_call.1} parent=1 // loop_header
      %s7 = sphi 0, %s11
      %p8 = scmp.ge.s32.totalorder %s7, 18
      %s14 = sphi 0, %s26
      %s15 = sphi 0, %s22
      %s16 = sphi 0, %s14
      %s17 = sphi 0, %s15
      %s18 = sphi 0, %s16
      %s19 = sphi 0, %s17
      %s31 = sphi 0, %s33
      %s34 = sphi 0, %s31
      %s35 = sphi 0, %s34
      %s51 = sphi 0, %s35
      %s57 = sphi 0, %s59
      %s60 = sphi 0, %s57
      %s61 = sphi 0, %s60
      %s77 = sphi 0, %s61
    $region4: #{tpu_custom_call.1} parent=1 // loop_header_branch
      %10 = sbr.rel (%p8) target = $region8
    $region5: #{tpu_custom_call.1} parent=1 // loop_body
      %s12 = ssub.s32 %s7, 1
      %s13 = ssub.s32 %s7, 2
      %s20 = sadd.s32 1, %s15
      %p21 = scmp.ge.s32.totalorder %s20, 4
      %s22 = scalar_select %p21, 0, %s20
      %s23 = sadd.s32 1, %s14
      %s24 = scalar_select %p21, %s23, %s14
      %p25 = scmp.ge.s32.totalorder %s24, 4
      %s26 = scalar_select %p25, 0, %s24
      %s27 = ssub.s32 %s14, %s26
      %s28 = ssub.s32 %s15, %s22
      %s29 = sor.u32 %s27, %s28
      %p30 = scmp.eq.s32.totalorder %s29, 0
      %s32 = sadd.s32 %s31, 1
      %s33 = scalar_select %p30, %s31, %s32
      %p36 = pneg %p30
      %p37 = scmp.eq.s32.totalorder %s7, 15
      %p38 = por %p36, %p37
      %p39 = scmp.ne.s32.totalorder %s31, %s34
      %p40 = scmp.eq.s32.totalorder %s7, 0
      %p41 = por %p39, %p40
      %p42 = scmp.ne.s32.totalorder %s31, %s34
      %p43 = scmp.eq.s32.totalorder %s12, 15
      %p44 = por %p42, %p43
      %p45 = scmp.ne.s32.totalorder %s34, %s35
      %p46 = scmp.eq.s32.totalorder %s12, 0
      %p47 = por %p45, %p46
      %p48 = scmp.ne.s32.totalorder %s34, %s35
      %p49 = scmp.eq.s32.totalorder %s13, 15
      %p50 = por %p48, %p49
      %p52 = scmp.ne.s32.totalorder %s35, %s51
      %p53 = scmp.eq.s32.totalorder %s13, 0
      %p54 = por %p52, %p53
      %s55 = ssub.s32 %s14, %s26
      %p56 = scmp.eq.s32.totalorder %s55, 0
      %s58 = sadd.s32 %s57, 1
      %s59 = scalar_select %p56, %s57, %s58
      %p62 = pneg %p56
      %p63 = scmp.eq.s32.totalorder %s7, 15
      %p64 = por %p62, %p63
      %p65 = scmp.ne.s32.totalorder %s57, %s60
      %p66 = scmp.eq.s32.totalorder %s7, 0
      %p67 = por %p65, %p66
      %p68 = scmp.ne.s32.totalorder %s57, %s60
      %p69 = scmp.eq.s32.totalorder %s12, 15
      %p70 = por %p68, %p69
      %p71 = scmp.ne.s32.totalorder %s60, %s61
      %p72 = scmp.eq.s32.totalorder %s12, 0
      %p73 = por %p71, %p72
      %p74 = scmp.ne.s32.totalorder %s60, %s61
      %p75 = scmp.eq.s32.totalorder %s13, 15
      %p76 = por %p74, %p75
      %p78 = scmp.ne.s32.totalorder %s61, %s77
      %p79 = scmp.eq.s32.totalorder %s13, 0
      %p80 = por %p78, %p79
      %p81 = scmp.le.s32.totalorder 1, %s7
      %p82 = scmp.lt.s32.totalorder %s7, 17
      %p83 = pnand %p81, %p82
      %p84 = pneg %p83
      // Predicated region
      $region9: #{tpu_custom_call.1} parent=5 // pred_check
        _
      $region10: #{tpu_custom_call.1} parent=5 // pred_check_branch
        %86 = sbr.rel (%p83) target = $region12
      $region11: #{tpu_custom_call.1} parent=5 // pred_region
        %s87 = ssub.s32 %s7, 1
      $region12: #{tpu_custom_call.1} parent=5 // pred_fallthru
        _
      %p88 = scmp.lt.s32.totalorder %s7, 16
      // Predicated region
      $region13: #{tpu_custom_call.1} parent=5 // pred_check
        %p89 = pneg %p88
      $region14: #{tpu_custom_call.1} parent=5 // pred_check_branch
        %91 = sbr.rel (%p89) target = $region16
      $region15: #{tpu_custom_call.1} parent=5 // pred_region
        // Predicated region
        $region17: #{tpu_custom_call.1} parent=15 // pred_check
          %p92 = pneg %p41
        $region18: #{tpu_custom_call.1} parent=15 // pred_check_branch
          %94 = sbr.rel (%p92) target = $region20
        $region19: #{tpu_custom_call.1} parent=15 // pred_region
          %s95 = sand.u32 %s31, 1
          %s96 = sand.u32 %s31, 1
          %s97 = smul.addr %s96, 256
          %s98 = scalar_lea.vmem [#allocation3], %s97
          %s99 = smul.u32 16, %s14
          %s100 = smul.u32 2, %s15
          %s101 = ssub.s32 63, %s99
          %p102 = scmp.lt.s32.totalorder %s101, 16
          %s103 = scalar_select %p102, %s101, 16
          %s104 = smul.u32 8, %s103
          %s105 = smul.u32 %s104, 2
          %p106 = scmp.ne.s32.totalorder 0, %s105
          %s107 = smul.addr %s99, 8
          %s108 = sadd.s32 %s100, %s107
          %s109 = smul.addr %s108, 8
          %s110 = scalar_lea.vmem %s0, %s109
          // Predicated region
          $region21: #{tpu_custom_call.1} parent=19 // pred_check
            %p111 = pneg %p106
          $region22: #{tpu_custom_call.1} parent=19 // pred_check_branch
            %113 = sbr.rel (%p111) target = $region24
          $region23: #{tpu_custom_call.1} parent=19 // pred_region
            // Predicated region
            $region25: #{tpu_custom_call.1} parent=23 // pred_check
              _
            $region26: #{tpu_custom_call.1} parent=23 // pred_check_branch
              %115 = sbr.rel (0) target = $region28
            $region27: #{tpu_custom_call.1} parent=23 // pred_region
              %s116 = sshrl.u32 %s103, 4
              // While loop
              $region29: #{tpu_custom_call.1} parent=27 // loop_pre_header
                _
              $region30: #{tpu_custom_call.1} parent=27 // loop_header
                %s118 = sphi 0, %s120
                %p119 = scmp.ge.s32.totalorder %s118, %s116
                %s123 = sphi 0, %s192
                %s124 = sphi %s110, %s195
                %s125 = sphi %s98, %s196
              $region31: #{tpu_custom_call.1} parent=27 // loop_header_branch
                %122 = sbr.rel (%p119) target = $region35
              $region32: #{tpu_custom_call.1} parent=27 // loop_body
                %v126 = vld [vmem:[%s124] sm:$0xff]
                %127 = vst [vmem:[%s125] sm:$0xff] %v126
                %v128 = vld [vmem:[%s124 + $0x40] sm:$0xff]
                %129 = vst [vmem:[%s125 + $0x10] sm:$0xff] %v128
                %v130 = vld [vmem:[%s124 + $0x80] sm:$0xff]
                %131 = vst [vmem:[%s125 + $0x20] sm:$0xff] %v130
                %v132 = vld [vmem:[%s124 + $0xc0] sm:$0xff]
                %133 = vst [vmem:[%s125 + $0x30] sm:$0xff] %v132
                %v134 = vld [vmem:[%s124 + $0x100] sm:$0xff]
                %135 = vst [vmem:[%s125 + $0x40] sm:$0xff] %v134
                %v136 = vld [vmem:[%s124 + $0x140] sm:$0xff]
                %137 = vst [vmem:[%s125 + $0x50] sm:$0xff] %v136
                %v138 = vld [vmem:[%s124 + $0x180] sm:$0xff]
                %139 = vst [vmem:[%s125 + $0x60] sm:$0xff] %v138
                %v140 = vld [vmem:[%s124 + $0x1c0] sm:$0xff]
                %141 = vst [vmem:[%s125 + $0x70] sm:$0xff] %v140
                %v142 = vld [vmem:[%s124 + $0x200] sm:$0xff]
                %143 = vst [vmem:[%s125 + $0x80] sm:$0xff] %v142
                %v144 = vld [vmem:[%s124 + $0x240] sm:$0xff]
                %145 = vst [vmem:[%s125 + $0x90] sm:$0xff] %v144
                %v146 = vld [vmem:[%s124 + $0x280] sm:$0xff]
                %147 = vst [vmem:[%s125 + $0xa0] sm:$0xff] %v146
                %v148 = vld [vmem:[%s124 + $0x2c0] sm:$0xff]
                %149 = vst [vmem:[%s125 + $0xb0] sm:$0xff] %v148
                %v150 = vld [vmem:[%s124 + $0x300] sm:$0xff]
                %151 = vst [vmem:[%s125 + $0xc0] sm:$0xff] %v150
                %v152 = vld [vmem:[%s124 + $0x340] sm:$0xff]
                %153 = vst [vmem:[%s125 + $0xd0] sm:$0xff] %v152
                %v154 = vld [vmem:[%s124 + $0x380] sm:$0xff]
                %155 = vst [vmem:[%s125 + $0xe0] sm:$0xff] %v154
                %v156 = vld [vmem:[%s124 + $0x3c0] sm:$0xff]
                %157 = vst [vmem:[%s125 + $0xf0] sm:$0xff] %v156
                %v158 = vld [vmem:[%s124 + $0x8] sm:$0xff]
                %159 = vst [vmem:[%s125 + $0x8] sm:$0xff] %v158
                %v160 = vld [vmem:[%s124 + $0x48] sm:$0xff]
                %161 = vst [vmem:[%s125 + $0x18] sm:$0xff] %v160
                %v162 = vld [vmem:[%s124 + $0x88] sm:$0xff]
                %163 = vst [vmem:[%s125 + $0x28] sm:$0xff] %v162
                %v164 = vld [vmem:[%s124 + $0xc8] sm:$0xff]
                %165 = vst [vmem:[%s125 + $0x38] sm:$0xff] %v164
                %v166 = vld [vmem:[%s124 + $0x108] sm:$0xff]
                %167 = vst [vmem:[%s125 + $0x48] sm:$0xff] %v166
                %v168 = vld [vmem:[%s124 + $0x148] sm:$0xff]
                %169 = vst [vmem:[%s125 + $0x58] sm:$0xff] %v168
                %v170 = vld [vmem:[%s124 + $0x188] sm:$0xff]
                %171 = vst [vmem:[%s125 + $0x68] sm:$0xff] %v170
                %v172 = vld [vmem:[%s124 + $0x1c8] sm:$0xff]
                %173 = vst [vmem:[%s125 + $0x78] sm:$0xff] %v172
                %v174 = vld [vmem:[%s124 + $0x208] sm:$0xff]
                %175 = vst [vmem:[%s125 + $0x88] sm:$0xff] %v174
                %v176 = vld [vmem:[%s124 + $0x248] sm:$0xff]
                %177 = vst [vmem:[%s125 + $0x98] sm:$0xff] %v176
                %v178 = vld [vmem:[%s124 + $0x288] sm:$0xff]
                %179 = vst [vmem:[%s125 + $0xa8] sm:$0xff] %v178
                %v180 = vld [vmem:[%s124 + $0x2c8] sm:$0xff]
                %181 = vst [vmem:[%s125 + $0xb8] sm:$0xff] %v180
                %v182 = vld [vmem:[%s124 + $0x308] sm:$0xff]
                %183 = vst [vmem:[%s125 + $0xc8] sm:$0xff] %v182
                %v184 = vld [vmem:[%s124 + $0x348] sm:$0xff]
                %185 = vst [vmem:[%s125 + $0xd8] sm:$0xff] %v184
                %v186 = vld [vmem:[%s124 + $0x388] sm:$0xff]
                %187 = vst [vmem:[%s125 + $0xe8] sm:$0xff] %v186
                %v188 = vld [vmem:[%s124 + $0x3c8] sm:$0xff]
                %189 = vst [vmem:[%s125 + $0xf8] sm:$0xff] %v188
                %s190 = sadd.s32 1, %s123
                %p191 = scmp.ge.s32.totalorder %s190, %s116
                %s192 = scalar_select %p191, 0, %s190
                %s193 = smul.u32 %s192, 1024
                %s194 = smul.u32 %s192, 256
                %s195 = scalar_lea.vmem %s110, %s193
                %s196 = scalar_lea.vmem %s98, %s194 [#allocation3]
              $region33: #{tpu_custom_call.1} parent=27 // loop_footer
                %s120 = sadd.s32 %s118, 1
              $region34: #{tpu_custom_call.1} parent=27 // loop_footer_branch
                %117 = sbr.rel target = $region30
              $region35: #{tpu_custom_call.1} parent=27 // loop_exit
                _
              %s197 = sshrl.u32 %s103, 4
              %s198 = sand.u32 %s103, 15
              %s199 = smul.u32 %s197, 16
              %s200 = smul.u32 64, %s199
              %s201 = scalar_lea.vmem %s110, %s200
              %s202 = smul.u32 16, %s199
              %s203 = scalar_lea.vmem %s98, %s202 [#allocation3]
              // While loop
              $region36: #{tpu_custom_call.1} parent=27 // loop_pre_header
                _
              $region37: #{tpu_custom_call.1} parent=27 // loop_header
                %s205 = sphi 0, %s207
                %p206 = scmp.ge.s32.totalorder %s205, %s198
                %s210 = sphi 0, %s219
                %s211 = sphi %s201, %s222
                %s212 = sphi %s203, %s223
              $region38: #{tpu_custom_call.1} parent=27 // loop_header_branch
                %209 = sbr.rel (%p206) target = $region42
              $region39: #{tpu_custom_call.1} parent=27 // loop_body
                %v213 = vld [vmem:[%s211] sm:$0xff]
                %214 = vst [vmem:[%s212] sm:$0xff] %v213
                %v215 = vld [vmem:[%s211 + $0x8] sm:$0xff]
                %216 = vst [vmem:[%s212 + $0x8] sm:$0xff] %v215
                %s217 = sadd.s32 1, %s210
                %p218 = scmp.ge.s32.totalorder %s217, %s198
                %s219 = scalar_select %p218, 0, %s217
                %s220 = smul.u32 %s219, 64
                %s221 = smul.u32 %s219, 16
                %s222 = scalar_lea.vmem %s201, %s220
                %s223 = scalar_lea.vmem %s203, %s221 [#allocation3]
              $region40: #{tpu_custom_call.1} parent=27 // loop_footer
                %s207 = sadd.s32 %s205, 1
              $region41: #{tpu_custom_call.1} parent=27 // loop_footer_branch
                %204 = sbr.rel target = $region37
              $region42: #{tpu_custom_call.1} parent=27 // loop_exit
                _
            $region28: #{tpu_custom_call.1} parent=23 // pred_fallthru
              _
            // Predicated region
            $region43: #{tpu_custom_call.1} parent=23 // pred_check
              _
            $region44: #{tpu_custom_call.1} parent=23 // pred_check_branch
              %225 = sbr.rel target = $region46
            $region45: #{tpu_custom_call.1} parent=23 // pred_region
              _
            $region46: #{tpu_custom_call.1} parent=23 // pred_fallthru
              _
          $region24: #{tpu_custom_call.1} parent=19 // pred_fallthru
            _
          %226 = vnop
        $region20: #{tpu_custom_call.1} parent=15 // pred_fallthru
          _
      $region16: #{tpu_custom_call.1} parent=5 // pred_fallthru
        _
      %p227 = scmp.le.s32.totalorder 1, %s7
      %p228 = scmp.lt.s32.totalorder %s7, 17
      %p229 = pnand %p227, %p228
      %p230 = pneg %p229
      // Predicated region
      $region47: #{tpu_custom_call.1} parent=5 // pred_check
        _
      $region48: #{tpu_custom_call.1} parent=5 // pred_check_branch
        %232 = sbr.rel (%p229) target = $region50
      $region49: #{tpu_custom_call.1} parent=5 // pred_region
        %s233 = ssub.s32 %s7, 1
        %s234 = sand.u32 %s34, 1
        %s235 = sand.u32 %s34, 1
        %s236 = smul.addr %s235, 256
        %s237 = scalar_lea.vmem [#allocation3], %s236
        // Predicated region
        $region51: #{tpu_custom_call.1} parent=49 // pred_check
          %p238 = pneg %p47
        $region52: #{tpu_custom_call.1} parent=49 // pred_check_branch
          %240 = sbr.rel (%p238) target = $region54
        $region53: #{tpu_custom_call.1} parent=49 // pred_region
          _
        $region54: #{tpu_custom_call.1} parent=49 // pred_fallthru
          _
        %s241 = sand.u32 %s34, 1
        %s242 = sand.u32 %s34, 1
        %s243 = smul.addr %s242, 256
        %s244 = scalar_lea.vmem [#allocation3], %s243
        %p245 = pneg %p47
        %p246 = pneg %p44
        %p247 = pneg %p73
        %p248 = pneg %p70
        %s249 = sand.u32 %s60, 1
        %s250 = sand.u32 %s60, 1
        %s251 = smul.addr %s250, 128
        %s252 = scalar_lea.vmem [#allocation4], %s251
        %s253 = smul.u32 16, %s16
        %s254 = smul.u32 2, %s17
        %s255 = ssub.s32 63, %s253
        %p256 = scmp.lt.s32.totalorder %s255, 16
        %s257 = scalar_select %p256, %s255, 16
        %s258 = smul.u32 8, %s257
        %s259 = smul.u32 %s258, 2
        %s260 = smul.u32 16, %s16
        %s261 = ssub.s32 63, %s260
        %p262 = scmp.lt.s32.totalorder %s261, 16
        %s263 = scalar_select %p262, %s261, 16
        %s264 = smul.u32 8, %s263
        %p265 = scmp.eq.s32.totalorder %s17, 0
        // Predicated region
        $region55: #{tpu_custom_call.1} parent=49 // pred_check
          %p266 = pneg %p265
        $region56: #{tpu_custom_call.1} parent=49 // pred_check_branch
          %268 = sbr.rel (%p266) target = $region58
        $region57: #{tpu_custom_call.1} parent=49 // pred_region
          %269 = vst [vmem:[#allocation2] sm:$0xff] 0.0
          %270 = vst [vmem:[#allocation2 + $0x8] sm:$0xff] 0.0
          %271 = vst [vmem:[#allocation2 + $0x10] sm:$0xff] 0.0
          %272 = vst [vmem:[#allocation2 + $0x18] sm:$0xff] 0.0
          %273 = vst [vmem:[#allocation2 + $0x20] sm:$0xff] 0.0
          %274 = vst [vmem:[#allocation2 + $0x28] sm:$0xff] 0.0
          %275 = vst [vmem:[#allocation2 + $0x30] sm:$0xff] 0.0
          %276 = vst [vmem:[#allocation2 + $0x38] sm:$0xff] 0.0
          %277 = vst [vmem:[#allocation2 + $0x40] sm:$0xff] 0.0
          %278 = vst [vmem:[#allocation2 + $0x48] sm:$0xff] 0.0
          %279 = vst [vmem:[#allocation2 + $0x50] sm:$0xff] 0.0
          %280 = vst [vmem:[#allocation2 + $0x58] sm:$0xff] 0.0
          %281 = vst [vmem:[#allocation2 + $0x60] sm:$0xff] 0.0
          %282 = vst [vmem:[#allocation2 + $0x68] sm:$0xff] 0.0
          %283 = vst [vmem:[#allocation2 + $0x70] sm:$0xff] 0.0
          %284 = vst [vmem:[#allocation2 + $0x78] sm:$0xff] 0.0
        $region58: #{tpu_custom_call.1} parent=49 // pred_fallthru
          _
        %v285 = vld [vmem:[%s237] sm:$0xff]
        %v286 = vld [vmem:[%s237 + $0x8] sm:$0xff]
        %v287 = vld [vmem:[%s237 + $0x10] sm:$0xff]
        %v288 = vld [vmem:[%s237 + $0x18] sm:$0xff]
        %v289 = vld [vmem:[%s237 + $0x20] sm:$0xff]
        %v290 = vld [vmem:[%s237 + $0x28] sm:$0xff]
        %v291 = vld [vmem:[%s237 + $0x30] sm:$0xff]
        %v292 = vld [vmem:[%s237 + $0x38] sm:$0xff]
        %v293 = vld [vmem:[%s237 + $0x40] sm:$0xff]
        %v294 = vld [vmem:[%s237 + $0x48] sm:$0xff]
        %v295 = vld [vmem:[%s237 + $0x50] sm:$0xff]
        %v296 = vld [vmem:[%s237 + $0x58] sm:$0xff]
        %v297 = vld [vmem:[%s237 + $0x60] sm:$0xff]
        %v298 = vld [vmem:[%s237 + $0x68] sm:$0xff]
        %v299 = vld [vmem:[%s237 + $0x70] sm:$0xff]
        %v300 = vld [vmem:[%s237 + $0x78] sm:$0xff]
        %v301 = vld [vmem:[%s237 + $0x80] sm:$0xff]
        %v302 = vld [vmem:[%s237 + $0x88] sm:$0xff]
        %v303 = vld [vmem:[%s237 + $0x90] sm:$0xff]
        %v304 = vld [vmem:[%s237 + $0x98] sm:$0xff]
        %v305 = vld [vmem:[%s237 + $0xa0] sm:$0xff]
        %v306 = vld [vmem:[%s237 + $0xa8] sm:$0xff]
        %v307 = vld [vmem:[%s237 + $0xb0] sm:$0xff]
        %v308 = vld [vmem:[%s237 + $0xb8] sm:$0xff]
        %v309 = vld [vmem:[%s237 + $0xc0] sm:$0xff]
        %v310 = vld [vmem:[%s237 + $0xc8] sm:$0xff]
        %v311 = vld [vmem:[%s237 + $0xd0] sm:$0xff]
        %v312 = vld [vmem:[%s237 + $0xd8] sm:$0xff]
        %v313 = vld [vmem:[%s237 + $0xe0] sm:$0xff]
        %v314 = vld [vmem:[%s237 + $0xe8] sm:$0xff]
        %v315 = vld [vmem:[%s237 + $0xf0] sm:$0xff]
        %v316 = vld [vmem:[%s237 + $0xf8] sm:$0xff]
        %v317 = vlaneseq
        %v318 = vand.u32 %v317, 127
        %s319 = smul.u32 %s17, 256
        %v320 = vstv %s319
        %v321 = vadd.s32 %v318, %v320
        %vm322 = vcmp.lt.s32.totalorder %v321, 1000
        %v323 = vsel %vm322, %v285, 0.0
        %v324 = vsel %vm322, %v287, 0.0
        %v325 = vsel %vm322, %v289, 0.0
        %v326 = vsel %vm322, %v291, 0.0
        %v327 = vsel %vm322, %v293, 0.0
        %v328 = vsel %vm322, %v295, 0.0
        %v329 = vsel %vm322, %v297, 0.0
        %v330 = vsel %vm322, %v299, 0.0
        %v331 = vsel %vm322, %v301, 0.0
        %v332 = vsel %vm322, %v303, 0.0
        %v333 = vsel %vm322, %v305, 0.0
        %v334 = vsel %vm322, %v307, 0.0
        %v335 = vsel %vm322, %v309, 0.0
        %v336 = vsel %vm322, %v311, 0.0
        %v337 = vsel %vm322, %v313, 0.0
        %v338 = vsel %vm322, %v315, 0.0
        %s339 = sadd.s32 %s319, 128
        %v340 = vstv %s339
        %v341 = vadd.s32 %v318, %v340
        %vm342 = vcmp.lt.s32.totalorder %v341, 1000
        %v343 = vsel %vm342, %v286, 0.0
        %v344 = vsel %vm342, %v288, 0.0
        %v345 = vsel %vm342, %v290, 0.0
        %v346 = vsel %vm342, %v292, 0.0
        %v347 = vsel %vm342, %v294, 0.0
        %v348 = vsel %vm342, %v296, 0.0
        %v349 = vsel %vm342, %v298, 0.0
        %v350 = vsel %vm342, %v300, 0.0
        %v351 = vsel %vm342, %v302, 0.0
        %v352 = vsel %vm342, %v304, 0.0
        %v353 = vsel %vm342, %v306, 0.0
        %v354 = vsel %vm342, %v308, 0.0
        %v355 = vsel %vm342, %v310, 0.0
        %v356 = vsel %vm342, %v312, 0.0
        %v357 = vsel %vm342, %v314, 0.0
        %v358 = vsel %vm342, %v316, 0.0
        %v359 = vadd.f32 %v323, %v343
        %v360 = vadd.f32 %v324, %v344
        %v361 = vadd.f32 %v325, %v345
        %v362 = vadd.f32 %v326, %v346
        %v363 = vadd.f32 %v327, %v347
        %v364 = vadd.f32 %v328, %v348
        %v365 = vadd.f32 %v329, %v349
        %v366 = vadd.f32 %v330, %v350
        %v367 = vadd.f32 %v331, %v351
        %v368 = vadd.f32 %v332, %v352
        %v369 = vadd.f32 %v333, %v353
        %v370 = vadd.f32 %v334, %v354
        %v371 = vadd.f32 %v335, %v355
        %v372 = vadd.f32 %v336, %v356
        %v373 = vadd.f32 %v337, %v357
        %v374 = vadd.f32 %v338, %v358
        %v375 = vld [vmem:[#allocation2] sm:$0xff]
        %v376 = vld [vmem:[#allocation2 + $0x8] sm:$0xff]
        %v377 = vld [vmem:[#allocation2 + $0x10] sm:$0xff]
        %v378 = vld [vmem:[#allocation2 + $0x18] sm:$0xff]
        %v379 = vld [vmem:[#allocation2 + $0x20] sm:$0xff]
        %v380 = vld [vmem:[#allocation2 + $0x28] sm:$0xff]
        %v381 = vld [vmem:[#allocation2 + $0x30] sm:$0xff]
        %v382 = vld [vmem:[#allocation2 + $0x38] sm:$0xff]
        %v383 = vld [vmem:[#allocation2 + $0x40] sm:$0xff]
        %v384 = vld [vmem:[#allocation2 + $0x48] sm:$0xff]
        %v385 = vld [vmem:[#allocation2 + $0x50] sm:$0xff]
        %v386 = vld [vmem:[#allocation2 + $0x58] sm:$0xff]
        %v387 = vld [vmem:[#allocation2 + $0x60] sm:$0xff]
        %v388 = vld [vmem:[#allocation2 + $0x68] sm:$0xff]
        %v389 = vld [vmem:[#allocation2 + $0x70] sm:$0xff]
        %v390 = vld [vmem:[#allocation2 + $0x78] sm:$0xff]
        %v391 = vadd.f32 %v375, %v359
        %v392 = vadd.f32 %v376, %v360
        %v393 = vadd.f32 %v377, %v361
        %v394 = vadd.f32 %v378, %v362
        %v395 = vadd.f32 %v379, %v363
        %v396 = vadd.f32 %v380, %v364
        %v397 = vadd.f32 %v381, %v365
        %v398 = vadd.f32 %v382, %v366
        %v399 = vadd.f32 %v383, %v367
        %v400 = vadd.f32 %v384, %v368
        %v401 = vadd.f32 %v385, %v369
        %v402 = vadd.f32 %v386, %v370
        %v403 = vadd.f32 %v387, %v371
        %v404 = vadd.f32 %v388, %v372
        %v405 = vadd.f32 %v389, %v373
        %v406 = vadd.f32 %v390, %v374
        %407 = vst [vmem:[#allocation2] sm:$0xff] %v391
        %408 = vst [vmem:[#allocation2 + $0x8] sm:$0xff] %v392
        %409 = vst [vmem:[#allocation2 + $0x10] sm:$0xff] %v393
        %410 = vst [vmem:[#allocation2 + $0x18] sm:$0xff] %v394
        %411 = vst [vmem:[#allocation2 + $0x20] sm:$0xff] %v395
        %412 = vst [vmem:[#allocation2 + $0x28] sm:$0xff] %v396
        %413 = vst [vmem:[#allocation2 + $0x30] sm:$0xff] %v397
        %414 = vst [vmem:[#allocation2 + $0x38] sm:$0xff] %v398
        %415 = vst [vmem:[#allocation2 + $0x40] sm:$0xff] %v399
        %416 = vst [vmem:[#allocation2 + $0x48] sm:$0xff] %v400
        %417 = vst [vmem:[#allocation2 + $0x50] sm:$0xff] %v401
        %418 = vst [vmem:[#allocation2 + $0x58] sm:$0xff] %v402
        %419 = vst [vmem:[#allocation2 + $0x60] sm:$0xff] %v403
        %420 = vst [vmem:[#allocation2 + $0x68] sm:$0xff] %v404
        %421 = vst [vmem:[#allocation2 + $0x70] sm:$0xff] %v405
        %422 = vst [vmem:[#allocation2 + $0x78] sm:$0xff] %v406
        %p423 = scmp.eq.s32.totalorder %s17, 3
        // Predicated region
        $region59: #{tpu_custom_call.1} parent=49 // pred_check
          %p424 = pneg %p423
        $region60: #{tpu_custom_call.1} parent=49 // pred_check_branch
          %426 = sbr.rel (%p424) target = $region62
        $region61: #{tpu_custom_call.1} parent=49 // pred_region
          %v427 = vld [vmem:[#allocation2] sm:$0xff]
          %v428 = vld [vmem:[#allocation2 + $0x8] sm:$0xff]
          %v429 = vld [vmem:[#allocation2 + $0x10] sm:$0xff]
          %v430 = vld [vmem:[#allocation2 + $0x18] sm:$0xff]
          %v431 = vld [vmem:[#allocation2 + $0x20] sm:$0xff]
          %v432 = vld [vmem:[#allocation2 + $0x28] sm:$0xff]
          %v433 = vld [vmem:[#allocation2 + $0x30] sm:$0xff]
          %v434 = vld [vmem:[#allocation2 + $0x38] sm:$0xff]
          %v435 = vld [vmem:[#allocation2 + $0x40] sm:$0xff]
          %v436 = vld [vmem:[#allocation2 + $0x48] sm:$0xff]
          %v437 = vld [vmem:[#allocation2 + $0x50] sm:$0xff]
          %v438 = vld [vmem:[#allocation2 + $0x58] sm:$0xff]
          %v439 = vld [vmem:[#allocation2 + $0x60] sm:$0xff]
          %v440 = vld [vmem:[#allocation2 + $0x68] sm:$0xff]
          %v441 = vld [vmem:[#allocation2 + $0x70] sm:$0xff]
          %v442 = vld [vmem:[#allocation2 + $0x78] sm:$0xff]
          %443 = vadd.xlane.f32.xlu0 %v427
          %v444 = vpop.xlane.xlu0 %443
          %445 = vadd.xlane.f32.xlu0 %v428
          %v446 = vpop.xlane.xlu0 %445
          %447 = vadd.xlane.f32.xlu0 %v429
          %v448 = vpop.xlane.xlu0 %447
          %449 = vadd.xlane.f32.xlu0 %v430
          %v450 = vpop.xlane.xlu0 %449
          %451 = vadd.xlane.f32.xlu0 %v431
          %v452 = vpop.xlane.xlu0 %451
          %453 = vadd.xlane.f32.xlu0 %v432
          %v454 = vpop.xlane.xlu0 %453
          %455 = vadd.xlane.f32.xlu0 %v433
          %v456 = vpop.xlane.xlu0 %455
          %457 = vadd.xlane.f32.xlu0 %v434
          %v458 = vpop.xlane.xlu0 %457
          %459 = vadd.xlane.f32.xlu0 %v435
          %v460 = vpop.xlane.xlu0 %459
          %461 = vadd.xlane.f32.xlu0 %v436
          %v462 = vpop.xlane.xlu0 %461
          %463 = vadd.xlane.f32.xlu0 %v437
          %v464 = vpop.xlane.xlu0 %463
          %465 = vadd.xlane.f32.xlu0 %v438
          %v466 = vpop.xlane.xlu0 %465
          %467 = vadd.xlane.f32.xlu0 %v439
          %v468 = vpop.xlane.xlu0 %467
          %469 = vadd.xlane.f32.xlu0 %v440
          %v470 = vpop.xlane.xlu0 %469
          %471 = vadd.xlane.f32.xlu0 %v441
          %v472 = vpop.xlane.xlu0 %471
          %473 = vadd.xlane.f32.xlu0 %v442
          %v474 = vpop.xlane.xlu0 %473
          %v475 = vmul.f32 %v444, 0.001
          %v476 = vmul.f32 %v446, 0.001
          %v477 = vmul.f32 %v448, 0.001
          %v478 = vmul.f32 %v450, 0.001
          %v479 = vmul.f32 %v452, 0.001
          %v480 = vmul.f32 %v454, 0.001
          %v481 = vmul.f32 %v456, 0.001
          %v482 = vmul.f32 %v458, 0.001
          %v483 = vmul.f32 %v460, 0.001
          %v484 = vmul.f32 %v462, 0.001
          %v485 = vmul.f32 %v464, 0.001
          %v486 = vmul.f32 %v466, 0.001
          %v487 = vmul.f32 %v468, 0.001
          %v488 = vmul.f32 %v470, 0.001
          %v489 = vmul.f32 %v472, 0.001
          %v490 = vmul.f32 %v474, 0.001
          %vm491 = vcmask 7168
          %492 = vst.msk [vmem:[%s252] sm:$0xff] %vm491, %v475
          %493 = vst.msk [vmem:[%s252 + $0x8] sm:$0xff] %vm491, %v476
          %494 = vst.msk [vmem:[%s252 + $0x10] sm:$0xff] %vm491, %v477
          %495 = vst.msk [vmem:[%s252 + $0x18] sm:$0xff] %vm491, %v478
          %496 = vst.msk [vmem:[%s252 + $0x20] sm:$0xff] %vm491, %v479
          %497 = vst.msk [vmem:[%s252 + $0x28] sm:$0xff] %vm491, %v480
          %498 = vst.msk [vmem:[%s252 + $0x30] sm:$0xff] %vm491, %v481
          %499 = vst.msk [vmem:[%s252 + $0x38] sm:$0xff] %vm491, %v482
          %500 = vst.msk [vmem:[%s252 + $0x40] sm:$0xff] %vm491, %v483
          %501 = vst.msk [vmem:[%s252 + $0x48] sm:$0xff] %vm491, %v484
          %502 = vst.msk [vmem:[%s252 + $0x50] sm:$0xff] %vm491, %v485
          %503 = vst.msk [vmem:[%s252 + $0x58] sm:$0xff] %vm491, %v486
          %504 = vst.msk [vmem:[%s252 + $0x60] sm:$0xff] %vm491, %v487
          %505 = vst.msk [vmem:[%s252 + $0x68] sm:$0xff] %vm491, %v488
          %506 = vst.msk [vmem:[%s252 + $0x70] sm:$0xff] %vm491, %v489
          %507 = vst.msk [vmem:[%s252 + $0x78] sm:$0xff] %vm491, %v490
        $region62: #{tpu_custom_call.1} parent=49 // pred_fallthru
          _
        %s508 = sand.u32 %s60, 1
        %s509 = sand.u32 %s60, 1
        %s510 = smul.addr %s509, 128
        %s511 = scalar_lea.vmem [#allocation4], %s510
        // Predicated region
        $region63: #{tpu_custom_call.1} parent=49 // pred_check
          %p512 = pneg %p70
        $region64: #{tpu_custom_call.1} parent=49 // pred_check_branch
          %514 = sbr.rel (%p512) target = $region66
        $region65: #{tpu_custom_call.1} parent=49 // pred_region
          %s515 = smul.u32 16, %s16
          %s516 = ssub.s32 63, %s515
          %p517 = scmp.lt.s32.totalorder %s516, 16
          %s518 = scalar_select %p517, %s516, 16
          %s519 = smul.u32 8, %s518
          %p520 = scmp.ne.s32.totalorder 0, %s519
          %s521 = smul.addr %s515, 8
          %s522 = scalar_lea.vmem %s1, %s521
          // Predicated region
          $region67: #{tpu_custom_call.1} parent=65 // pred_check
            %p523 = pneg %p520
          $region68: #{tpu_custom_call.1} parent=65 // pred_check_branch
            %525 = sbr.rel (%p523) target = $region70
          $region69: #{tpu_custom_call.1} parent=65 // pred_region
            // Predicated region
            $region71: #{tpu_custom_call.1} parent=69 // pred_check
              _
            $region72: #{tpu_custom_call.1} parent=69 // pred_check_branch
              %527 = sbr.rel (0) target = $region74
            $region73: #{tpu_custom_call.1} parent=69 // pred_region
              // Predicated region
              $region93: #{tpu_custom_call.1} parent=73 // pred_check
                _
              $region94: #{tpu_custom_call.1} parent=73 // pred_check_branch
                %607 = sbr.rel (0) target = $region96
              $region95: #{tpu_custom_call.1} parent=73 // pred_region
                %s608 = sshrl.u32 %s518, 4
                // While loop
                $region97: #{tpu_custom_call.1} parent=95 // loop_pre_header
                  _
                $region98: #{tpu_custom_call.1} parent=95 // loop_header
                  %s610 = sphi 0, %s612
                  %p611 = scmp.ge.s32.totalorder %s610, %s608
                  %s615 = sphi 0, %s652
                  %s616 = sphi %s511, %s655
                  %s617 = sphi %s522, %s656
                $region99: #{tpu_custom_call.1} parent=95 // loop_header_branch
                  %614 = sbr.rel (%p611) target = $region103
                $region100: #{tpu_custom_call.1} parent=95 // loop_body
                  %v618 = vld [vmem:[%s616] sm:$0xff]
                  %619 = vst [vmem:[%s617] sm:$0xff] %v618
                  %v620 = vld [vmem:[%s616 + $0x8] sm:$0xff]
                  %621 = vst [vmem:[%s617 + $0x8] sm:$0xff] %v620
                  %v622 = vld [vmem:[%s616 + $0x10] sm:$0xff]
                  %623 = vst [vmem:[%s617 + $0x10] sm:$0xff] %v622
                  %v624 = vld [vmem:[%s616 + $0x18] sm:$0xff]
                  %625 = vst [vmem:[%s617 + $0x18] sm:$0xff] %v624
                  %v626 = vld [vmem:[%s616 + $0x20] sm:$0xff]
                  %627 = vst [vmem:[%s617 + $0x20] sm:$0xff] %v626
                  %v628 = vld [vmem:[%s616 + $0x28] sm:$0xff]
                  %629 = vst [vmem:[%s617 + $0x28] sm:$0xff] %v628
                  %v630 = vld [vmem:[%s616 + $0x30] sm:$0xff]
                  %631 = vst [vmem:[%s617 + $0x30] sm:$0xff] %v630
                  %v632 = vld [vmem:[%s616 + $0x38] sm:$0xff]
                  %633 = vst [vmem:[%s617 + $0x38] sm:$0xff] %v632
                  %v634 = vld [vmem:[%s616 + $0x40] sm:$0xff]
                  %635 = vst [vmem:[%s617 + $0x40] sm:$0xff] %v634
                  %v636 = vld [vmem:[%s616 + $0x48] sm:$0xff]
                  %637 = vst [vmem:[%s617 + $0x48] sm:$0xff] %v636
                  %v638 = vld [vmem:[%s616 + $0x50] sm:$0xff]
                  %639 = vst [vmem:[%s617 + $0x50] sm:$0xff] %v638
                  %v640 = vld [vmem:[%s616 + $0x58] sm:$0xff]
                  %641 = vst [vmem:[%s617 + $0x58] sm:$0xff] %v640
                  %v642 = vld [vmem:[%s616 + $0x60] sm:$0xff]
                  %643 = vst [vmem:[%s617 + $0x60] sm:$0xff] %v642
                  %v644 = vld [vmem:[%s616 + $0x68] sm:$0xff]
                  %645 = vst [vmem:[%s617 + $0x68] sm:$0xff] %v644
                  %v646 = vld [vmem:[%s616 + $0x70] sm:$0xff]
                  %647 = vst [vmem:[%s617 + $0x70] sm:$0xff] %v646
                  %v648 = vld [vmem:[%s616 + $0x78] sm:$0xff]
                  %649 = vst [vmem:[%s617 + $0x78] sm:$0xff] %v648
                  %s650 = sadd.s32 1, %s615
                  %p651 = scmp.ge.s32.totalorder %s650, %s608
                  %s652 = scalar_select %p651, 0, %s650
                  %s653 = smul.u32 %s652, 128
                  %s654 = smul.u32 %s652, 128
                  %s655 = scalar_lea.vmem %s511, %s653 [#allocation4]
                  %s656 = scalar_lea.vmem %s522, %s654
                $region101: #{tpu_custom_call.1} parent=95 // loop_footer
                  %s612 = sadd.s32 %s610, 1
                $region102: #{tpu_custom_call.1} parent=95 // loop_footer_branch
                  %609 = sbr.rel target = $region98
                $region103: #{tpu_custom_call.1} parent=95 // loop_exit
                  _
                %s657 = sshrl.u32 %s518, 4
                %s658 = sand.u32 %s518, 15
                %s659 = smul.u32 %s657, 16
                %s660 = smul.u32 8, %s659
                %s661 = scalar_lea.vmem %s511, %s660 [#allocation4]
                %s662 = smul.u32 8, %s659
                %s663 = scalar_lea.vmem %s522, %s662
                // While loop
                $region104: #{tpu_custom_call.1} parent=95 // loop_pre_header
                  _
                $region105: #{tpu_custom_call.1} parent=95 // loop_header
                  %s665 = sphi 0, %s667
                  %p666 = scmp.ge.s32.totalorder %s665, %s658
                  %s670 = sphi 0, %s677
                  %s671 = sphi %s661, %s680
                  %s672 = sphi %s663, %s681
                $region106: #{tpu_custom_call.1} parent=95 // loop_header_branch
                  %669 = sbr.rel (%p666) target = $region110
                $region107: #{tpu_custom_call.1} parent=95 // loop_body
                  %v673 = vld [vmem:[%s671] sm:$0xff]
                  %674 = vst [vmem:[%s672] sm:$0xff] %v673
                  %s675 = sadd.s32 1, %s670
                  %p676 = scmp.ge.s32.totalorder %s675, %s658
                  %s677 = scalar_select %p676, 0, %s675
                  %s678 = smul.u32 %s677, 8
                  %s679 = smul.u32 %s677, 8
                  %s680 = scalar_lea.vmem %s661, %s678 [#allocation4]
                  %s681 = scalar_lea.vmem %s663, %s679
                $region108: #{tpu_custom_call.1} parent=95 // loop_footer
                  %s667 = sadd.s32 %s665, 1
                $region109: #{tpu_custom_call.1} parent=95 // loop_footer_branch
                  %664 = sbr.rel target = $region105
                $region110: #{tpu_custom_call.1} parent=95 // loop_exit
                  _
              $region96: #{tpu_custom_call.1} parent=73 // pred_fallthru
                _
              // Predicated region
              $region111: #{tpu_custom_call.1} parent=73 // pred_check
                _
              $region112: #{tpu_custom_call.1} parent=73 // pred_check_branch
                %683 = sbr.rel target = $region114
              $region113: #{tpu_custom_call.1} parent=73 // pred_region
                _
              $region114: #{tpu_custom_call.1} parent=73 // pred_fallthru
                _
            $region74: #{tpu_custom_call.1} parent=69 // pred_fallthru
              _
            // Predicated region
            $region75: #{tpu_custom_call.1} parent=69 // pred_check
              _
            $region76: #{tpu_custom_call.1} parent=69 // pred_check_branch
              %529 = sbr.rel target = $region78
            $region77: #{tpu_custom_call.1} parent=69 // pred_region
              %s531 = ssub.s32 256, 1
              %s532 = sshrl.u32 %s518, 4
              // While loop
              $region79: #{tpu_custom_call.1} parent=77 // loop_pre_header
                _
              $region80: #{tpu_custom_call.1} parent=77 // loop_header
                %s534 = sphi 0, %s536
                %p535 = scmp.ge.s32.totalorder %s534, %s532
                %s539 = sphi 0, %s576
                %s540 = sphi %s511, %s579
                %s541 = sphi %s522, %s580
              $region81: #{tpu_custom_call.1} parent=77 // loop_header_branch
                %538 = sbr.rel (%p535) target = $region85
              $region82: #{tpu_custom_call.1} parent=77 // loop_body
                %v542 = vld [vmem:[%s540] sm:%s531]
                %543 = vst [vmem:[%s541] sm:%s531] %v542
                %v544 = vld [vmem:[%s540 + $0x8] sm:%s531]
                %545 = vst [vmem:[%s541 + $0x8] sm:%s531] %v544
                %v546 = vld [vmem:[%s540 + $0x10] sm:%s531]
                %547 = vst [vmem:[%s541 + $0x10] sm:%s531] %v546
                %v548 = vld [vmem:[%s540 + $0x18] sm:%s531]
                %549 = vst [vmem:[%s541 + $0x18] sm:%s531] %v548
                %v550 = vld [vmem:[%s540 + $0x20] sm:%s531]
                %551 = vst [vmem:[%s541 + $0x20] sm:%s531] %v550
                %v552 = vld [vmem:[%s540 + $0x28] sm:%s531]
                %553 = vst [vmem:[%s541 + $0x28] sm:%s531] %v552
                %v554 = vld [vmem:[%s540 + $0x30] sm:%s531]
                %555 = vst [vmem:[%s541 + $0x30] sm:%s531] %v554
                %v556 = vld [vmem:[%s540 + $0x38] sm:%s531]
                %557 = vst [vmem:[%s541 + $0x38] sm:%s531] %v556
                %v558 = vld [vmem:[%s540 + $0x40] sm:%s531]
                %559 = vst [vmem:[%s541 + $0x40] sm:%s531] %v558
                %v560 = vld [vmem:[%s540 + $0x48] sm:%s531]
                %561 = vst [vmem:[%s541 + $0x48] sm:%s531] %v560
                %v562 = vld [vmem:[%s540 + $0x50] sm:%s531]
                %563 = vst [vmem:[%s541 + $0x50] sm:%s531] %v562
                %v564 = vld [vmem:[%s540 + $0x58] sm:%s531]
                %565 = vst [vmem:[%s541 + $0x58] sm:%s531] %v564
                %v566 = vld [vmem:[%s540 + $0x60] sm:%s531]
                %567 = vst [vmem:[%s541 + $0x60] sm:%s531] %v566
                %v568 = vld [vmem:[%s540 + $0x68] sm:%s531]
                %569 = vst [vmem:[%s541 + $0x68] sm:%s531] %v568
                %v570 = vld [vmem:[%s540 + $0x70] sm:%s531]
                %571 = vst [vmem:[%s541 + $0x70] sm:%s531] %v570
                %v572 = vld [vmem:[%s540 + $0x78] sm:%s531]
                %573 = vst [vmem:[%s541 + $0x78] sm:%s531] %v572
                %s574 = sadd.s32 1, %s539
                %p575 = scmp.ge.s32.totalorder %s574, %s532
                %s576 = scalar_select %p575, 0, %s574
                %s577 = smul.u32 %s576, 128
                %s578 = smul.u32 %s576, 128
                %s579 = scalar_lea.vmem %s511, %s577 [#allocation4]
                %s580 = scalar_lea.vmem %s522, %s578
              $region83: #{tpu_custom_call.1} parent=77 // loop_footer
                %s536 = sadd.s32 %s534, 1
              $region84: #{tpu_custom_call.1} parent=77 // loop_footer_branch
                %533 = sbr.rel target = $region80
              $region85: #{tpu_custom_call.1} parent=77 // loop_exit
                _
              %s581 = sshrl.u32 %s518, 4
              %s582 = sand.u32 %s518, 15
              %s583 = smul.u32 %s581, 16
              %s584 = smul.u32 8, %s583
              %s585 = scalar_lea.vmem %s511, %s584 [#allocation4]
              %s586 = smul.u32 8, %s583
              %s587 = scalar_lea.vmem %s522, %s586
              // While loop
              $region86: #{tpu_custom_call.1} parent=77 // loop_pre_header
                _
              $region87: #{tpu_custom_call.1} parent=77 // loop_header
                %s589 = sphi 0, %s591
                %p590 = scmp.ge.s32.totalorder %s589, %s582
                %s594 = sphi 0, %s601
                %s595 = sphi %s585, %s604
                %s596 = sphi %s587, %s605
              $region88: #{tpu_custom_call.1} parent=77 // loop_header_branch
                %593 = sbr.rel (%p590) target = $region92
              $region89: #{tpu_custom_call.1} parent=77 // loop_body
                %v597 = vld [vmem:[%s595] sm:%s531]
                %598 = vst [vmem:[%s596] sm:%s531] %v597
                %s599 = sadd.s32 1, %s594
                %p600 = scmp.ge.s32.totalorder %s599, %s582
                %s601 = scalar_select %p600, 0, %s599
                %s602 = smul.u32 %s601, 8
                %s603 = smul.u32 %s601, 8
                %s604 = scalar_lea.vmem %s585, %s602 [#allocation4]
                %s605 = scalar_lea.vmem %s587, %s603
              $region90: #{tpu_custom_call.1} parent=77 // loop_footer
                %s591 = sadd.s32 %s589, 1
              $region91: #{tpu_custom_call.1} parent=77 // loop_footer_branch
                %588 = sbr.rel target = $region87
              $region92: #{tpu_custom_call.1} parent=77 // loop_exit
                _
            $region78: #{tpu_custom_call.1} parent=69 // pred_fallthru
              _
          $region70: #{tpu_custom_call.1} parent=65 // pred_fallthru
            _
          %684 = vnop
        $region66: #{tpu_custom_call.1} parent=49 // pred_fallthru
          _
      $region50: #{tpu_custom_call.1} parent=5 // pred_fallthru
        _
      %p685 = scmp.le.s32.totalorder 2, %s7
      // Predicated region
      $region115: #{tpu_custom_call.1} parent=5 // pred_check
        %p686 = pneg %p685
      $region116: #{tpu_custom_call.1} parent=5 // pred_check_branch
        %688 = sbr.rel (%p686) target = $region118
      $region117: #{tpu_custom_call.1} parent=5 // pred_region
        %s689 = ssub.s32 %s7, 2
        // Predicated region
        $region119: #{tpu_custom_call.1} parent=117 // pred_check
          %p690 = pneg %p76
        $region120: #{tpu_custom_call.1} parent=117 // pred_check_branch
          %692 = sbr.rel (%p690) target = $region122
        $region121: #{tpu_custom_call.1} parent=117 // pred_region
          %s693 = sand.u32 %s61, 1
          %s694 = sand.u32 %s61, 1
          %s695 = smul.addr %s694, 128
          %s696 = scalar_lea.vmem [#allocation4], %s695
        $region122: #{tpu_custom_call.1} parent=117 // pred_fallthru
          _
      $region118: #{tpu_custom_call.1} parent=5 // pred_fallthru
        _
    $region6: #{tpu_custom_call.1} parent=1 // loop_footer
      %s11 = sadd.s32 1, %s7
    $region7: #{tpu_custom_call.1} parent=1 // loop_footer_branch
      %6 = sbr.rel target = $region3
    $region8: #{tpu_custom_call.1} parent=1 // loop_exit
      _

</llo_original>
